<compile_context>
chip_gen: v7x
topology: tpu7x:2x2x1
jax: 0.10.0
libtpu: 0.0.40
codegen_flags: <defaults>
</compile_context>

<pallas_src>
import functools

import numpy as np
import jax
import jax.numpy as jnp
from jax.experimental import pallas as pl
from jax.experimental.pallas import tpu as pltpu

# --- static problem geometry (from the PyTorch module) -----------------------
C_IN, H_IN, W_IN = 4, 32, 32
C1, K1 = 6, 4                        # conv1: 4->6, kernel=stride=padding=4
C2, K2 = 2, 2                        # conv2: 6->2, kernel=stride=padding=2
H1 = W1 = H_IN // K1 + 2             # 10 (conv1 out; outer ring = bias only)
HO = WO = H1 // K2 + 2               # 7  (conv2 out; outer ring = b2 - 1)
PATCHES1 = (H_IN // K1) * (W_IN // K1)   # 64 inner conv1 patches (YCOLS = 64)
KDIM1 = C_IN * K1 * K1                   # 64 conv1 im2col feature dim
NTAPS = K2 * K2                          # 4 conv2 taps
OUT_ROWS, OUT_LANES = 8, 128             # lane-dense output slab per image


def _build_sel_h() -> jnp.ndarray:
    """(64, 4*128) 0/1 selector: lane block j = tap (kh,kw); column 128j+q maps
    the inner conv1 patch m that tap j of output q reads, to lane q=oh*7+ow.
    Border outputs / conv1-border taps have all-zero columns (handled by the
    precomputed bias slab)."""
    sel = np.zeros((NTAPS, PATCHES1, OUT_LANES), np.float32)
    for oh in range(1, HO - 1):
        for ow in range(1, WO - 1):
            q = oh * WO + ow
            for kh in range(K2):
                for kw in range(K2):
                    j = kh * K2 + kw
                    vr = 2 * (oh - 1) + kh          # conv1 row (0..9)
                    vc = 2 * (ow - 1) + kw          # conv1 col (0..9)
                    if 1 <= vr <= H1 - 2 and 1 <= vc <= W1 - 2:
                        m = (vr - 1) * (W_IN // K1) + (vc - 1)
                        sel[j, m, q] = 1.0
    return jnp.asarray(np.concatenate([sel[j] for j in range(NTAPS)], axis=1))


_SEL_H = _build_sel_h()                                   # (64, 512) constant

_q = np.arange(HO * WO)
_oh, _ow = _q // WO, _q % WO
_INNER_MASK_Q = jnp.asarray(
    ((_oh >= 1) & (_oh <= HO - 2) & (_ow >= 1) & (_ow <= WO - 2))
    .astype(np.float32))                                  # (49,) constant


def prepare_params(w1, b1, w2, b2):
    """One-time weight folding, hoisted out of the per-call hot path."""
    hp = jax.lax.Precision.HIGHEST
    w1m = w1.reshape(C1, KDIM1).astype(jnp.float32)                    # (6, 64)
    w2taps = jnp.transpose(w2, (2, 3, 0, 1)).reshape(NTAPS, C2, C1)    # (4, 2, 6)
    # A_j = W2_j @ W1  (conv1 and conv2 fused into one matrix per tap)
    a = jnp.einsum("jab,bf->jaf", w2taps.astype(jnp.float32), w1m,
                   precision=hp)                                       # (4, 2, 64)
    a32 = jnp.pad(a, ((0, 0), (0, OUT_ROWS - C2), (0, 0))).reshape(
        NTAPS * OUT_ROWS, KDIM1)                                       # (32, 64)
    # Lane-dense bias slab: (b2-1) on every valid lane; inner 5x5 lanes also
    # get every tap's b1 contribution (sum_j W2_j) @ b1.
    wsum = jnp.sum(w2.astype(jnp.float32), axis=(2, 3))                # (2, 6)
    inner_b = jnp.einsum("ab,b->a", wsum, b1.astype(jnp.float32),
                         precision=hp)                                 # (2,)
    vals = (b2.astype(jnp.float32) - 1.0)[:, None] \
        + inner_b[:, None] * _INNER_MASK_Q[None, :]                    # (2, 49)
    bias_slab = jnp.zeros((OUT_ROWS, OUT_LANES), jnp.float32) \
        .at[:C2, :HO * WO].set(vals)                                   # (8, 128)
    return a32, bias_slab


def _fused_kernel(p_ref, a32_ref, selh_ref, bias_ref, o_ref, *, bb):
    a32 = a32_ref[...]          # (32, 64)   fused conv1*conv2 weights (per tap)
    selh = selh_ref[...]        # (64, 512)  per-tap gather/scatter selectors
    bias = bias_ref[...]        # (8, 128)   all biases + the "-1", lane-dense
    for i in range(bb):         # static unroll over images in this batch block
        # Dot 1: all taps' fused weights against the im2col'd image.
        g = jnp.dot(a32, p_ref[i], preferred_element_type=jnp.float32)   # (32, 64)
        # Dot 2: patch gather + scatter to output lanes for all 4 taps at once.
        big = jnp.dot(g, selh, preferred_element_type=jnp.float32)       # (32, 512)
        # Tap j's contribution sits in the vreg-aligned diagonal block
        # big[8j:8j+8, 128j:128(j+1)]; sum them and add the bias slab.
        o_ref[i] = (bias
                    + big[0:8, 0:128]
                    + big[8:16, 128:256]
                    + big[16:24, 256:384]
                    + big[24:32, 384:512])


@jax.jit
def fused_forward(x, a32, bias_slab):
    n = x.shape[0]
    bb = n if n <= 8 else 8                       # images per grid step
    pad_n = (-n) % bb
    if pad_n:
        x = jnp.pad(x, ((0, pad_n), (0, 0), (0, 0), (0, 0)))
    nb = x.shape[0]

    # Pad-free im2col of conv1's inner 8x8 patches: feature axis (ci,kh,kw) on
    # sublanes, patch index m=ph*8+pw on lanes.  reshape+transpose+reshape
    # fuses to a single XLA copy of the 16 KiB input (no extra pad op now).
    xr = x.reshape(nb, C_IN, H_IN // K1, K1, W_IN // K1, K1)
    p1t = xr.transpose(0, 1, 3, 5, 2, 4).reshape(nb, KDIM1, PATCHES1)  # (nb,64,64)

    out = pl.pallas_call(
        functools.partial(_fused_kernel, bb=bb),
        out_shape=jax.ShapeDtypeStruct((nb, OUT_ROWS, OUT_LANES), jnp.float32),
        grid=(nb // bb,),
        in_specs=[
            pl.BlockSpec((bb, KDIM1, PATCHES1), lambda b: (b, 0, 0)),
            pl.BlockSpec((NTAPS * OUT_ROWS, KDIM1), lambda b: (0, 0)),
            pl.BlockSpec((KDIM1, NTAPS * OUT_LANES), lambda b: (0, 0)),
            pl.BlockSpec((OUT_ROWS, OUT_LANES), lambda b: (0, 0)),
        ],
        out_specs=pl.BlockSpec((bb, OUT_ROWS, OUT_LANES), lambda b: (b, 0, 0)),
        compiler_params=pltpu.CompilerParams(
            dimension_semantics=("parallel",)),
    )(p1t, a32, _SEL_H, bias_slab)

    # (nb, 8, 128) -> NCHW (n, 2, 7, 7); channels on rows, lane q = oh*7+ow.
    return out[:n, :C2, :HO * WO].reshape(n, C2, HO, WO)


def model_forward(x, w1, b1, w2, b2):
    return fused_forward(x, *prepare_params(w1, b1, w2, b2))


def _reference_forward(x, w1, b1, w2, b2):
    dn1 = jax.lax.conv_dimension_numbers(x.shape, w1.shape,
                                         ("NCHW", "OIHW", "NCHW"))
    v1 = jax.lax.conv_general_dilated(
        x, w1, window_strides=(K1, K1), padding=((K1, K1), (K1, K1)),
        dimension_numbers=dn1) + b1.reshape(1, -1, 1, 1)
    dn2 = jax.lax.conv_dimension_numbers(v1.shape, w2.shape,
                                         ("NCHW", "OIHW", "NCHW"))
    v2 = jax.lax.conv_general_dilated(
        v1, w2, window_strides=(K2, K2), padding=((K2, K2), (K2, K2)),
        dimension_numbers=dn2) + b2.reshape(1, -1, 1, 1)
    return v2 - 1.0


if __name__ == "__main__":
    key = jax.random.PRNGKey(0)
    kx, kw1, kb1, kw2, kb2 = jax.random.split(key, 5)

    # module expects 4x32x32 images; use a small batch of 2 to exercise the grid
    n = 2
    x = jax.random.uniform(kx, (n, C_IN, H_IN, W_IN), dtype=jnp.float32)

    # deterministic torch-like init: uniform in +/- 1/sqrt(fan_in)
    fan1 = C_IN * K1 * K1
    lim1 = 1.0 / np.sqrt(fan1)
    w1 = jax.random.uniform(kw1, (C1, C_IN, K1, K1), jnp.float32, -lim1, lim1)
    b1 = jax.random.uniform(kb1, (C1,), jnp.float32, -lim1, lim1)
    fan2 = C1 * K2 * K2
    lim2 = 1.0 / np.sqrt(fan2)
    w2 = jax.random.uniform(kw2, (C2, C1, K2, K2), jnp.float32, -lim2, lim2)
    b2 = jax.random.uniform(kb2, (C2,), jnp.float32, -lim2, lim2)

    params = prepare_params(w1, b1, w2, b2)     # hoisted one-time weight folding
    out = fused_forward(x, *params)
    out = jax.block_until_ready(out)

    ref = _reference_forward(x, w1, b1, w2, b2)
    assert out.shape == (n, C2, HO, WO), out.shape
    assert jnp.allclose(out, ref, atol=5e-5, rtol=1e-4), \
        float(jnp.max(jnp.abs(out - ref)))

    print("KERNEL_OK")
</pallas_src>

<mosaic_0001>
module attributes {stable_mosaic.version = 11 : i64} {
  func.func @_fused_kernel(%arg0: i32, %arg1: memref<2x64x64xf32, #tpu.memory_space<vmem>>, %arg2: memref<32x64xf32, #tpu.memory_space<vmem>>, %arg3: memref<64x512xf32, #tpu.memory_space<vmem>>, %arg4: memref<8x128xf32, #tpu.memory_space<vmem>>, %arg5: memref<2x8x128xf32, #tpu.memory_space<vmem>>) attributes {dimension_semantics = [#tpu.dimension_semantics<parallel>], iteration_bounds = array<i64: 1>, scalar_prefetch = 0 : i64, scratch_operands = 0 : i64, tpu.core_type = #tpu.core_type<tc>, window_params = [{transform_indices = @transform_0, window_bounds = array<i64: 2, 64, 64>}, {pipeline_mode = #tpu.pipeline_mode<synchronous>, transform_indices = @transform_1, window_bounds = array<i64: 32, 64>}, {pipeline_mode = #tpu.pipeline_mode<synchronous>, transform_indices = @transform_2, window_bounds = array<i64: 64, 512>}, {pipeline_mode = #tpu.pipeline_mode<synchronous>, transform_indices = @transform_3, window_bounds = array<i64: 8, 128>}, {transform_indices = @transform_4, window_bounds = array<i64: 2, 8, 128>}]} {
    %c0 = arith.constant 0 : index
    %c0_0 = arith.constant 0 : index
    %0 = vector.load %arg2[%c0, %c0_0] : memref<32x64xf32, #tpu.memory_space<vmem>>, vector<32x64xf32>
    %c0_1 = arith.constant 0 : index
    %c0_2 = arith.constant 0 : index
    %1 = vector.load %arg3[%c0_1, %c0_2] : memref<64x512xf32, #tpu.memory_space<vmem>>, vector<64x512xf32>
    %c0_3 = arith.constant 0 : index
    %c0_4 = arith.constant 0 : index
    %2 = vector.load %arg4[%c0_3, %c0_4] : memref<8x128xf32, #tpu.memory_space<vmem>>, vector<8x128xf32>
    %c0_5 = arith.constant 0 : index
    %c0_6 = arith.constant 0 : index
    %c0_7 = arith.constant 0 : index
    %3 = vector.load %arg1[%c0_5, %c0_6, %c0_7] : memref<2x64x64xf32, #tpu.memory_space<vmem>>, vector<1x64x64xf32>
    %4 = vector.shape_cast %3 : vector<1x64x64xf32> to vector<64x64xf32>
    %cst = arith.constant dense<0.000000e+00> : vector<32x64xf32>
    %5 = tpu.matmul %0, %4, %cst {dimension_numbers = #tpu.dot_dimension_numbers<[1], [0], [0], [1], [0, 0, 1, 1], [], []>} : vector<32x64xf32>, vector<64x64xf32>, vector<32x64xf32> -> vector<32x64xf32>
    %cst_8 = arith.constant dense<0.000000e+00> : vector<32x512xf32>
    %6 = tpu.matmul %5, %1, %cst_8 {dimension_numbers = #tpu.dot_dimension_numbers<[1], [0], [0], [1], [0, 0, 1, 1], [], []>} : vector<32x64xf32>, vector<64x512xf32>, vector<32x512xf32> -> vector<32x512xf32>
    %7 = vector.extract_strided_slice %6 {offsets = [0, 0], sizes = [8, 128], strides = [1, 1]} : vector<32x512xf32> to vector<8x128xf32>
    %8 = arith.addf %2, %7 : vector<8x128xf32>
    %9 = vector.extract_strided_slice %6 {offsets = [8, 128], sizes = [8, 128], strides = [1, 1]} : vector<32x512xf32> to vector<8x128xf32>
    %10 = arith.addf %8, %9 : vector<8x128xf32>
    %11 = vector.extract_strided_slice %6 {offsets = [16, 256], sizes = [8, 128], strides = [1, 1]} : vector<32x512xf32> to vector<8x128xf32>
    %12 = arith.addf %10, %11 : vector<8x128xf32>
    %13 = vector.extract_strided_slice %6 {offsets = [24, 384], sizes = [8, 128], strides = [1, 1]} : vector<32x512xf32> to vector<8x128xf32>
    %14 = arith.addf %12, %13 : vector<8x128xf32>
    %c0_9 = arith.constant 0 : index
    %c0_10 = arith.constant 0 : index
    %c0_11 = arith.constant 0 : index
    %15 = vector.load %arg5[%c0_9, %c0_10, %c0_11] : memref<2x8x128xf32, #tpu.memory_space<vmem>>, vector<1x8x128xf32>
    %16 = vector.shape_cast %15 : vector<1x8x128xf32> to vector<8x128xf32>
    %17 = vector.shape_cast %14 : vector<8x128xf32> to vector<1x8x128xf32>
    tpu.vector_store %arg5[%c0_9, %c0_10, %c0_11], %17 {strides = array<i32>} : memref<2x8x128xf32, #tpu.memory_space<vmem>>, vector<1x8x128xf32>,
    %c1 = arith.constant 1 : index
    %c0_12 = arith.constant 0 : index
    %c0_13 = arith.constant 0 : index
    %18 = vector.load %arg1[%c1, %c0_12, %c0_13] : memref<2x64x64xf32, #tpu.memory_space<vmem>>, vector<1x64x64xf32>
    %19 = vector.shape_cast %18 : vector<1x64x64xf32> to vector<64x64xf32>
    %cst_14 = arith.constant dense<0.000000e+00> : vector<32x64xf32>
    %20 = tpu.matmul %0, %19, %cst_14 {dimension_numbers = #tpu.dot_dimension_numbers<[1], [0], [0], [1], [0, 0, 1, 1], [], []>} : vector<32x64xf32>, vector<64x64xf32>, vector<32x64xf32> -> vector<32x64xf32>
    %cst_15 = arith.constant dense<0.000000e+00> : vector<32x512xf32>
    %21 = tpu.matmul %20, %1, %cst_15 {dimension_numbers = #tpu.dot_dimension_numbers<[1], [0], [0], [1], [0, 0, 1, 1], [], []>} : vector<32x64xf32>, vector<64x512xf32>, vector<32x512xf32> -> vector<32x512xf32>
    %22 = vector.extract_strided_slice %21 {offsets = [0, 0], sizes = [8, 128], strides = [1, 1]} : vector<32x512xf32> to vector<8x128xf32>
    %23 = arith.addf %2, %22 : vector<8x128xf32>
    %24 = vector.extract_strided_slice %21 {offsets = [8, 128], sizes = [8, 128], strides = [1, 1]} : vector<32x512xf32> to vector<8x128xf32>
    %25 = arith.addf %23, %24 : vector<8x128xf32>
    %26 = vector.extract_strided_slice %21 {offsets = [16, 256], sizes = [8, 128], strides = [1, 1]} : vector<32x512xf32> to vector<8x128xf32>
    %27 = arith.addf %25, %26 : vector<8x128xf32>
    %28 = vector.extract_strided_slice %21 {offsets = [24, 384], sizes = [8, 128], strides = [1, 1]} : vector<32x512xf32> to vector<8x128xf32>
    %29 = arith.addf %27, %28 : vector<8x128xf32>
    %c1_16 = arith.constant 1 : index
    %c0_17 = arith.constant 0 : index
    %c0_18 = arith.constant 0 : index
    %30 = vector.load %arg5[%c1_16, %c0_17, %c0_18] : memref<2x8x128xf32, #tpu.memory_space<vmem>>, vector<1x8x128xf32>
    %31 = vector.shape_cast %30 : vector<1x8x128xf32> to vector<8x128xf32>
    %32 = vector.shape_cast %29 : vector<8x128xf32> to vector<1x8x128xf32>
    tpu.vector_store %arg5[%c1_16, %c0_17, %c0_18], %32 {strides = array<i32>} : memref<2x8x128xf32, #tpu.memory_space<vmem>>, vector<1x8x128xf32>,
    return
  }
  func.func @transform_0(%arg0: i32) -> (i32, i32, i32) {
    %c0_i32 = arith.constant 0 : i32
    %c0_i32_0 = arith.constant 0 : i32
    %c0_i32_1 = arith.constant 0 : i32
    return %arg0, %c0_i32, %c0_i32_0 : i32, i32, i32
  }
  func.func @transform_1(%arg0: i32) -> (i32, i32) {
    %c0_i32 = arith.constant 0 : i32
    %c0_i32_0 = arith.constant 0 : i32
    %c0_i32_1 = arith.constant 0 : i32
    return %c0_i32, %c0_i32_0 : i32, i32
  }
  func.func @transform_2(%arg0: i32) -> (i32, i32) {
    %c0_i32 = arith.constant 0 : i32
    %c0_i32_0 = arith.constant 0 : i32
    %c0_i32_1 = arith.constant 0 : i32
    return %c0_i32, %c0_i32_0 : i32, i32
  }
  func.func @transform_3(%arg0: i32) -> (i32, i32) {
    %c0_i32 = arith.constant 0 : i32
    %c0_i32_0 = arith.constant 0 : i32
    %c0_i32_1 = arith.constant 0 : i32
    return %c0_i32, %c0_i32_0 : i32, i32
  }
  func.func @transform_4(%arg0: i32) -> (i32, i32, i32) {
    %c0_i32 = arith.constant 0 : i32
    %c0_i32_0 = arith.constant 0 : i32
    %c0_i32_1 = arith.constant 0 : i32
    return %arg0, %c0_i32, %c0_i32_0 : i32, i32, i32
  }
}

</mosaic_0001>

<llo_original>
// kernel: fused_forward.1
$region0: #{fused_forward.1}
  #allocation0 [shape = 'u32[]', space=smem, size = 0x4, offset = 0x4, fixed_abs, tag = 'smem constant byte address 0x4 - core index']
  #allocation1 [shape = 'u32[144,128]{1,0:T(1,128)}', space=vmem, size = 0x12000, scoped, tag = 'internal scratch']
  %s0 = inlined_call_operand.vmem [shape: f32[2,64,64], index: 0, kind: input, shape index: {}]
  %s1 = inlined_call_operand.vmem [shape: f32[32,64], index: 1, kind: input, shape index: {}]
  %s2 = inlined_call_operand.vmem [shape: f32[64,512], index: 2, kind: input, shape index: {}]
  %s3 = inlined_call_operand.vmem [shape: f32[8,128], index: 3, kind: input, shape index: {}]
  %s4 = inlined_call_operand.vmem [shape: f32[2,8,128], index: 4, kind: output, shape index: {}]
  %s5 = sld [smem:[#allocation0]]
  $region26: #{fused_forward.1} parent=0
    _
  %s7 = ssub.s32 1, %s5
  %s8 = scalar_select 0, %s7, %s5
  // Predicated region
  $region2: #{fused_forward.1} parent=0 // pred_check
    _
  $region3: #{fused_forward.1} parent=0 // pred_check_branch
    %10 = sbr.rel (0) target = $region5
  $region4: #{fused_forward.1} parent=0 // pred_region
    _
  $region5: #{fused_forward.1} parent=0 // pred_fallthru
    _
  // Predicated region
  $region6: #{fused_forward.1} parent=0 // pred_check
    _
  $region7: #{fused_forward.1} parent=0 // pred_check_branch
    %12 = sbr.rel (0) target = $region9
  $region8: #{fused_forward.1} parent=0 // pred_region
    _
  $region9: #{fused_forward.1} parent=0 // pred_fallthru
    _
  // Predicated region
  $region10: #{fused_forward.1} parent=0 // pred_check
    _
  $region11: #{fused_forward.1} parent=0 // pred_check_branch
    %14 = sbr.rel (0) target = $region13
  $region12: #{fused_forward.1} parent=0 // pred_region
    _
  $region13: #{fused_forward.1} parent=0 // pred_fallthru
    _
  // Predicated region
  $region14: #{fused_forward.1} parent=0 // pred_check
    _
  $region15: #{fused_forward.1} parent=0 // pred_check_branch
    %16 = sbr.rel (0) target = $region17
  $region16: #{fused_forward.1} parent=0 // pred_region
    _
  $region17: #{fused_forward.1} parent=0 // pred_fallthru
    _
  %v17 = vld [vmem:[%s1] sm:$0xff]
  %v18 = vld [vmem:[%s1 + $0x8] sm:$0xff]
  %v19 = vld [vmem:[%s1 + $0x10] sm:$0xff]
  %v20 = vld [vmem:[%s1 + $0x18] sm:$0xff]
  %v21 = vld [vmem:[%s2] sm:$0xff]
  %v22 = vld [vmem:[%s2 + $0x8] sm:$0xff]
  %v23 = vld [vmem:[%s2 + $0x10] sm:$0xff]
  %v24 = vld [vmem:[%s2 + $0x18] sm:$0xff]
  %v25 = vld [vmem:[%s2 + $0x20] sm:$0xff]
  %v26 = vld [vmem:[%s2 + $0x28] sm:$0xff]
  %v27 = vld [vmem:[%s2 + $0x30] sm:$0xff]
  %v28 = vld [vmem:[%s2 + $0x38] sm:$0xff]
  %v29 = vld [vmem:[%s2 + $0x40] sm:$0xff]
  %v30 = vld [vmem:[%s2 + $0x48] sm:$0xff]
  %v31 = vld [vmem:[%s2 + $0x50] sm:$0xff]
  %v32 = vld [vmem:[%s2 + $0x58] sm:$0xff]
  %v33 = vld [vmem:[%s2 + $0x60] sm:$0xff]
  %v34 = vld [vmem:[%s2 + $0x68] sm:$0xff]
  %v35 = vld [vmem:[%s2 + $0x70] sm:$0xff]
  %v36 = vld [vmem:[%s2 + $0x78] sm:$0xff]
  %v37 = vld [vmem:[%s2 + $0x80] sm:$0xff]
  %v38 = vld [vmem:[%s2 + $0x88] sm:$0xff]
  %v39 = vld [vmem:[%s2 + $0x90] sm:$0xff]
  %v40 = vld [vmem:[%s2 + $0x98] sm:$0xff]
  %v41 = vld [vmem:[%s2 + $0xa0] sm:$0xff]
  %v42 = vld [vmem:[%s2 + $0xa8] sm:$0xff]
  %v43 = vld [vmem:[%s2 + $0xb0] sm:$0xff]
  %v44 = vld [vmem:[%s2 + $0xb8] sm:$0xff]
  %v45 = vld [vmem:[%s2 + $0xc0] sm:$0xff]
  %v46 = vld [vmem:[%s2 + $0xc8] sm:$0xff]
  %v47 = vld [vmem:[%s2 + $0xd0] sm:$0xff]
  %v48 = vld [vmem:[%s2 + $0xd8] sm:$0xff]
  %v49 = vld [vmem:[%s2 + $0xe0] sm:$0xff]
  %v50 = vld [vmem:[%s2 + $0xe8] sm:$0xff]
  %v51 = vld [vmem:[%s2 + $0xf0] sm:$0xff]
  %v52 = vld [vmem:[%s2 + $0xf8] sm:$0xff]
  %v53 = vld [vmem:[%s3] sm:$0xff]
  %v54 = vld [vmem:[%s0] sm:$0xff]
  %v55 = vld [vmem:[%s0 + $0x8] sm:$0xff]
  %v56 = vld [vmem:[%s0 + $0x10] sm:$0xff]
  %v57 = vld [vmem:[%s0 + $0x18] sm:$0xff]
  %v58 = vld [vmem:[%s0 + $0x20] sm:$0xff]
  %v59 = vld [vmem:[%s0 + $0x28] sm:$0xff]
  %v60 = vld [vmem:[%s0 + $0x30] sm:$0xff]
  %v61 = vld [vmem:[%s0 + $0x38] sm:$0xff]
  %vm62 = vcmask 523264
  %v64 = vsel %vm62, %v17, 0
  %v67 = vsel %vm62, %v18, 0
  %v70 = vsel %vm62, %v19, 0
  %v73 = vsel %vm62, %v20, 0
  %75 = vmatprep.subr.mxu0 0.0
  %76 = vmatpush1.msra.mxu0 %v54
  %77 = vmatprep.subr.mxu0 0.0
  %78 = vmatpush1.msra.mxu0 %v55
  %79 = vmatprep.subr.mxu0 0.0
  %80 = vmatpush1.msra.mxu0 %v56
  %81 = vmatprep.subr.mxu0 0.0
  %82 = vmatpush1.msra.mxu0 %v57
  %83 = vmatprep.subr.mxu0 0.0
  %84 = vmatpush1.msra.mxu0 %v58
  %85 = vmatprep.subr.mxu0 0.0
  %86 = vmatpush1.msra.mxu0 %v59
  %87 = vmatprep.subr.mxu0 0.0
  %88 = vmatpush1.msra.mxu0 %v60
  %89 = vmatprep.subr.mxu0 0.0
  %90 = vmatpush1.msra.mxu0 %v61
  %91 = vmatprep.subr.mxu0 0.0
  %92 = vmatpush1.msra.mxu0 0.0
  %93 = vmatprep.subr.mxu0 0.0
  %94 = vmatpush1.msra.mxu0 0.0
  %95 = vmatprep.subr.mxu0 0.0
  %96 = vmatpush1.msra.mxu0 0.0
  %97 = vmatprep.subr.mxu0 0.0
  %98 = vmatpush1.msra.mxu0 0.0
  %99 = vmatprep.subr.mxu0 0.0
  %100 = vmatpush1.msra.mxu0 0.0
  %101 = vmatprep.subr.mxu0 0.0
  %102 = vmatpush1.msra.mxu0 0.0
  %103 = vmatprep.subr.mxu0 0.0
  %104 = vmatpush1.msra.mxu0 0.0
  %105 = vmatprep.subr.mxu0 0.0
  %106 = vmatpush1.msra.mxu0 0.0
  %107 = vmatprep.subr.mxu0 0.0
  %108 = vmatpush1.msra.mxu0 0.0
  %109 = vmatprep.subr.mxu0 0.0
  %110 = vmatpush1.msra.mxu0 0.0
  %111 = vmatprep.subr.mxu0 0.0
  %112 = vmatpush1.msra.mxu0 0.0
  %113 = vmatprep.subr.mxu0 0.0
  %114 = vmatpush1.msra.mxu0 0.0
  %115 = vmatprep.subr.mxu0 0.0
  %116 = vmatpush1.msra.mxu0 0.0
  %117 = vmatprep.subr.mxu0 0.0
  %118 = vmatpush1.msra.mxu0 0.0
  %119 = vmatprep.subr.mxu0 0.0
  %120 = vmatpush1.msra.mxu0 0.0
  %121 = vmatprep.subr.mxu0 0.0
  %122 = vmatpush1.msra.mxu0 0.0
  %123 = vmatprep.subr.mxu0 0.0
  %124 = vmatpush1.msra.mxu0 0.0
  %125 = vmatprep.subr.mxu0 0.0
  %126 = vmatpush1.msra.mxu0 0.0
  %127 = vmatprep.subr.mxu0 0.0
  %128 = vmatpush1.msra.mxu0 0.0
  %129 = vmatprep.subr.mxu0 0.0
  %130 = vmatpush1.msra.mxu0 0.0
  %131 = vmatprep.subr.mxu0 0.0
  %132 = vmatpush1.msra.mxu0 0.0
  %133 = vmatprep.subr.mxu0 0.0
  %134 = vmatpush1.msra.mxu0 0.0
  %135 = vmatprep.subr.mxu0 0.0
  %136 = vmatpush1.msra.mxu0 0.0
  %137 = vmatprep.subr.mxu0 0.0
  %138 = vmatpush1.msra.mxu0 0.0
  %139 = vmatprep.mubr.f32.mxu0 0.0
  %140 = vmatmul.mubr.f32.gmra.mrb[0].mxu0 %v64
  %v141 = vpop.f32.mrb[0].mxu0
  %v142 = vadd.f32 0.0, %v141
  %v143 = vpop.f32.mrb[0].mxu0
  %144 = vmatprep.mubr.f32.mxu0 0.0
  %145 = vmatmul.mubr.f32.gmra.mrb[0].mxu0 %v67
  %v146 = vpop.f32.mrb[0].mxu0
  %v147 = vadd.f32 0.0, %v146
  %v148 = vpop.f32.mrb[0].mxu0
  %149 = vmatprep.mubr.f32.mxu0 0.0
  %150 = vmatmul.mubr.f32.gmra.mrb[0].mxu0 %v70
  %v151 = vpop.f32.mrb[0].mxu0
  %v152 = vadd.f32 0.0, %v151
  %v153 = vpop.f32.mrb[0].mxu0
  %154 = vmatprep.mubr.f32.mxu0 0.0
  %155 = vmatmul.mubr.f32.gmra.mrb[0].mxu0 %v73
  %v156 = vpop.f32.mrb[0].mxu0
  %v157 = vadd.f32 0.0, %v156
  %v158 = vpop.f32.mrb[0].mxu0
  %159 = vdwg.mxu0
  %v161 = vsel %vm62, %v142, 0
  %v164 = vsel %vm62, %v147, 0
  %v167 = vsel %vm62, %v152, 0
  %v170 = vsel %vm62, %v157, 0
  %172 = vmatprep.subr.mxu0 %v22
  %173 = vmatpush1.msra.mxu0 %v21
  %174 = vmatprep.subr.mxu0 %v26
  %175 = vmatpush1.msra.mxu0 %v25
  %176 = vmatprep.subr.mxu0 %v30
  %177 = vmatpush1.msra.mxu0 %v29
  %178 = vmatprep.subr.mxu0 %v34
  %179 = vmatpush1.msra.mxu0 %v33
  %180 = vmatprep.subr.mxu0 %v38
  %181 = vmatpush1.msra.mxu0 %v37
  %182 = vmatprep.subr.mxu0 %v42
  %183 = vmatpush1.msra.mxu0 %v41
  %184 = vmatprep.subr.mxu0 %v46
  %185 = vmatpush1.msra.mxu0 %v45
  %186 = vmatprep.subr.mxu0 %v50
  %187 = vmatpush1.msra.mxu0 %v49
  %188 = vmatprep.subr.mxu0 0.0
  %189 = vmatpush1.msra.mxu0 0.0
  %190 = vmatprep.subr.mxu0 0.0
  %191 = vmatpush1.msra.mxu0 0.0
  %192 = vmatprep.subr.mxu0 0.0
  %193 = vmatpush1.msra.mxu0 0.0
  %194 = vmatprep.subr.mxu0 0.0
  %195 = vmatpush1.msra.mxu0 0.0
  %196 = vmatprep.subr.mxu0 0.0
  %197 = vmatpush1.msra.mxu0 0.0
  %198 = vmatprep.subr.mxu0 0.0
  %199 = vmatpush1.msra.mxu0 0.0
  %200 = vmatprep.subr.mxu0 0.0
  %201 = vmatpush1.msra.mxu0 0.0
  %202 = vmatprep.subr.mxu0 0.0
  %203 = vmatpush1.msra.mxu0 0.0
  %204 = vmatprep.subr.mxu0 0.0
  %205 = vmatpush1.msra.mxu0 0.0
  %206 = vmatprep.subr.mxu0 0.0
  %207 = vmatpush1.msra.mxu0 0.0
  %208 = vmatprep.subr.mxu0 0.0
  %209 = vmatpush1.msra.mxu0 0.0
  %210 = vmatprep.subr.mxu0 0.0
  %211 = vmatpush1.msra.mxu0 0.0
  %212 = vmatprep.subr.mxu0 0.0
  %213 = vmatpush1.msra.mxu0 0.0
  %214 = vmatprep.subr.mxu0 0.0
  %215 = vmatpush1.msra.mxu0 0.0
  %216 = vmatprep.subr.mxu0 0.0
  %217 = vmatpush1.msra.mxu0 0.0
  %218 = vmatprep.subr.mxu0 0.0
  %219 = vmatpush1.msra.mxu0 0.0
  %220 = vmatprep.subr.mxu0 0.0
  %221 = vmatpush1.msra.mxu0 0.0
  %222 = vmatprep.subr.mxu0 0.0
  %223 = vmatpush1.msra.mxu0 0.0
  %224 = vmatprep.subr.mxu0 0.0
  %225 = vmatpush1.msra.mxu0 0.0
  %226 = vmatprep.subr.mxu0 0.0
  %227 = vmatpush1.msra.mxu0 0.0
  %228 = vmatprep.subr.mxu0 0.0
  %229 = vmatpush1.msra.mxu0 0.0
  %230 = vmatprep.subr.mxu0 0.0
  %231 = vmatpush1.msra.mxu0 0.0
  %232 = vmatprep.subr.mxu0 0.0
  %233 = vmatpush1.msra.mxu0 0.0
  %234 = vmatprep.subr.mxu0 0.0
  %235 = vmatpush1.msra.mxu0 0.0
  %236 = vmatprep.mubr.f32.mxu0 0.0
  %237 = vmatmul.mubr.f32.gmra.mrb[0].mxu0 %v161
  %v238 = vpop.f32.mrb[0].mxu0
  %v239 = vadd.f32 0.0, %v238
  %v240 = vpop.f32.mrb[0].mxu0
  %241 = vmatprep.mubr.f32.mxu0 0.0
  %242 = vmatmul.mubr.f32.gmra.mrb[0].mxu0 %v164
  %v243 = vpop.f32.mrb[0].mxu0
  %v244 = vpop.f32.mrb[0].mxu0
  %v245 = vadd.f32 0.0, %v244
  %246 = vmatprep.mubr.f32.mxu0 0.0
  %247 = vmatmul.mubr.f32.gmra.mrb[0].mxu0 %v167
  %v248 = vpop.f32.mrb[0].mxu0
  %v249 = vpop.f32.mrb[0].mxu0
  %250 = vmatprep.mubr.f32.mxu0 0.0
  %251 = vmatmul.mubr.f32.gmra.mrb[0].mxu0 %v170
  %v252 = vpop.f32.mrb[0].mxu0
  %v253 = vpop.f32.mrb[0].mxu0
  %254 = vdwg.mxu0
  %255 = vmatprep.subr.mxu0 %v24
  %256 = vmatpush1.msra.mxu0 %v23
  %257 = vmatprep.subr.mxu0 %v28
  %258 = vmatpush1.msra.mxu0 %v27
  %259 = vmatprep.subr.mxu0 %v32
  %260 = vmatpush1.msra.mxu0 %v31
  %261 = vmatprep.subr.mxu0 %v36
  %262 = vmatpush1.msra.mxu0 %v35
  %263 = vmatprep.subr.mxu0 %v40
  %264 = vmatpush1.msra.mxu0 %v39
  %265 = vmatprep.subr.mxu0 %v44
  %266 = vmatpush1.msra.mxu0 %v43
  %267 = vmatprep.subr.mxu0 %v48
  %268 = vmatpush1.msra.mxu0 %v47
  %269 = vmatprep.subr.mxu0 %v52
  %270 = vmatpush1.msra.mxu0 %v51
  %271 = vmatprep.subr.mxu0 0.0
  %272 = vmatpush1.msra.mxu0 0.0
  %273 = vmatprep.subr.mxu0 0.0
  %274 = vmatpush1.msra.mxu0 0.0
  %275 = vmatprep.subr.mxu0 0.0
  %276 = vmatpush1.msra.mxu0 0.0
  %277 = vmatprep.subr.mxu0 0.0
  %278 = vmatpush1.msra.mxu0 0.0
  %279 = vmatprep.subr.mxu0 0.0
  %280 = vmatpush1.msra.mxu0 0.0
  %281 = vmatprep.subr.mxu0 0.0
  %282 = vmatpush1.msra.mxu0 0.0
  %283 = vmatprep.subr.mxu0 0.0
  %284 = vmatpush1.msra.mxu0 0.0
  %285 = vmatprep.subr.mxu0 0.0
  %286 = vmatpush1.msra.mxu0 0.0
  %287 = vmatprep.subr.mxu0 0.0
  %288 = vmatpush1.msra.mxu0 0.0
  %289 = vmatprep.subr.mxu0 0.0
  %290 = vmatpush1.msra.mxu0 0.0
  %291 = vmatprep.subr.mxu0 0.0
  %292 = vmatpush1.msra.mxu0 0.0
  %293 = vmatprep.subr.mxu0 0.0
  %294 = vmatpush1.msra.mxu0 0.0
  %295 = vmatprep.subr.mxu0 0.0
  %296 = vmatpush1.msra.mxu0 0.0
  %297 = vmatprep.subr.mxu0 0.0
  %298 = vmatpush1.msra.mxu0 0.0
  %299 = vmatprep.subr.mxu0 0.0
  %300 = vmatpush1.msra.mxu0 0.0
  %301 = vmatprep.subr.mxu0 0.0
  %302 = vmatpush1.msra.mxu0 0.0
  %303 = vmatprep.subr.mxu0 0.0
  %304 = vmatpush1.msra.mxu0 0.0
  %305 = vmatprep.subr.mxu0 0.0
  %306 = vmatpush1.msra.mxu0 0.0
  %307 = vmatprep.subr.mxu0 0.0
  %308 = vmatpush1.msra.mxu0 0.0
  %309 = vmatprep.subr.mxu0 0.0
  %310 = vmatpush1.msra.mxu0 0.0
  %311 = vmatprep.subr.mxu0 0.0
  %312 = vmatpush1.msra.mxu0 0.0
  %313 = vmatprep.subr.mxu0 0.0
  %314 = vmatpush1.msra.mxu0 0.0
  %315 = vmatprep.subr.mxu0 0.0
  %316 = vmatpush1.msra.mxu0 0.0
  %317 = vmatprep.subr.mxu0 0.0
  %318 = vmatpush1.msra.mxu0 0.0
  %319 = vmatprep.mubr.f32.mxu0 0.0
  %320 = vmatmul.mubr.f32.gmra.mrb[0].mxu0 %v161
  %v321 = vpop.f32.mrb[0].mxu0
  %v322 = vpop.f32.mrb[0].mxu0
  %323 = vmatprep.mubr.f32.mxu0 0.0
  %324 = vmatmul.mubr.f32.gmra.mrb[0].mxu0 %v164
  %v325 = vpop.f32.mrb[0].mxu0
  %v326 = vpop.f32.mrb[0].mxu0
  %327 = vmatprep.mubr.f32.mxu0 0.0
  %328 = vmatmul.mubr.f32.gmra.mrb[0].mxu0 %v167
  %v329 = vpop.f32.mrb[0].mxu0
  %v330 = vadd.f32 0.0, %v329
  %v331 = vpop.f32.mrb[0].mxu0
  %332 = vmatprep.mubr.f32.mxu0 0.0
  %333 = vmatmul.mubr.f32.gmra.mrb[0].mxu0 %v170
  %v334 = vpop.f32.mrb[0].mxu0
  %v335 = vpop.f32.mrb[0].mxu0
  %v336 = vadd.f32 0.0, %v335
  %337 = vdwg.mxu0
  %v338 = vadd.f32 %v53, %v239
  %v339 = vadd.f32 %v338, %v245
  %v340 = vadd.f32 %v339, %v330
  %v341 = vadd.f32 %v340, %v336
  %342 = vst [vmem:[%s4] sm:$0xff] %v341
  %s343 = scalar_lea.vmem %s0, 64
  %v344 = vld [vmem:[%s343] sm:$0xff]
  %v345 = vld [vmem:[%s343 + $0x8] sm:$0xff]
  %v346 = vld [vmem:[%s343 + $0x10] sm:$0xff]
  %v347 = vld [vmem:[%s343 + $0x18] sm:$0xff]
  %v348 = vld [vmem:[%s343 + $0x20] sm:$0xff]
  %v349 = vld [vmem:[%s343 + $0x28] sm:$0xff]
  %v350 = vld [vmem:[%s343 + $0x30] sm:$0xff]
  %v351 = vld [vmem:[%s343 + $0x38] sm:$0xff]
  %352 = vmatprep.subr.mxu0 0.0
  %353 = vmatpush1.msra.mxu0 %v344
  %354 = vmatprep.subr.mxu0 0.0
  %355 = vmatpush1.msra.mxu0 %v345
  %356 = vmatprep.subr.mxu0 0.0
  %357 = vmatpush1.msra.mxu0 %v346
  %358 = vmatprep.subr.mxu0 0.0
  %359 = vmatpush1.msra.mxu0 %v347
  %360 = vmatprep.subr.mxu0 0.0
  %361 = vmatpush1.msra.mxu0 %v348
  %362 = vmatprep.subr.mxu0 0.0
  %363 = vmatpush1.msra.mxu0 %v349
  %364 = vmatprep.subr.mxu0 0.0
  %365 = vmatpush1.msra.mxu0 %v350
  %366 = vmatprep.subr.mxu0 0.0
  %367 = vmatpush1.msra.mxu0 %v351
  %368 = vmatprep.subr.mxu0 0.0
  %369 = vmatpush1.msra.mxu0 0.0
  %370 = vmatprep.subr.mxu0 0.0
  %371 = vmatpush1.msra.mxu0 0.0
  %372 = vmatprep.subr.mxu0 0.0
  %373 = vmatpush1.msra.mxu0 0.0
  %374 = vmatprep.subr.mxu0 0.0
  %375 = vmatpush1.msra.mxu0 0.0
  %376 = vmatprep.subr.mxu0 0.0
  %377 = vmatpush1.msra.mxu0 0.0
  %378 = vmatprep.subr.mxu0 0.0
  %379 = vmatpush1.msra.mxu0 0.0
  %380 = vmatprep.subr.mxu0 0.0
  %381 = vmatpush1.msra.mxu0 0.0
  %382 = vmatprep.subr.mxu0 0.0
  %383 = vmatpush1.msra.mxu0 0.0
  %384 = vmatprep.subr.mxu0 0.0
  %385 = vmatpush1.msra.mxu0 0.0
  %386 = vmatprep.subr.mxu0 0.0
  %387 = vmatpush1.msra.mxu0 0.0
  %388 = vmatprep.subr.mxu0 0.0
  %389 = vmatpush1.msra.mxu0 0.0
  %390 = vmatprep.subr.mxu0 0.0
  %391 = vmatpush1.msra.mxu0 0.0
  %392 = vmatprep.subr.mxu0 0.0
  %393 = vmatpush1.msra.mxu0 0.0
  %394 = vmatprep.subr.mxu0 0.0
  %395 = vmatpush1.msra.mxu0 0.0
  %396 = vmatprep.subr.mxu0 0.0
  %397 = vmatpush1.msra.mxu0 0.0
  %398 = vmatprep.subr.mxu0 0.0
  %399 = vmatpush1.msra.mxu0 0.0
  %400 = vmatprep.subr.mxu0 0.0
  %401 = vmatpush1.msra.mxu0 0.0
  %402 = vmatprep.subr.mxu0 0.0
  %403 = vmatpush1.msra.mxu0 0.0
  %404 = vmatprep.subr.mxu0 0.0
  %405 = vmatpush1.msra.mxu0 0.0
  %406 = vmatprep.subr.mxu0 0.0
  %407 = vmatpush1.msra.mxu0 0.0
  %408 = vmatprep.subr.mxu0 0.0
  %409 = vmatpush1.msra.mxu0 0.0
  %410 = vmatprep.subr.mxu0 0.0
  %411 = vmatpush1.msra.mxu0 0.0
  %412 = vmatprep.subr.mxu0 0.0
  %413 = vmatpush1.msra.mxu0 0.0
  %414 = vmatprep.subr.mxu0 0.0
  %415 = vmatpush1.msra.mxu0 0.0
  %416 = vmatprep.mubr.f32.mxu0 0.0
  %417 = vmatmul.mubr.f32.gmra.mrb[0].mxu0 %v64
  %v418 = vpop.f32.mrb[0].mxu0
  %v419 = vadd.f32 0.0, %v418
  %v420 = vpop.f32.mrb[0].mxu0
  %421 = vmatprep.mubr.f32.mxu0 0.0
  %422 = vmatmul.mubr.f32.gmra.mrb[0].mxu0 %v67
  %v423 = vpop.f32.mrb[0].mxu0
  %v424 = vadd.f32 0.0, %v423
  %v425 = vpop.f32.mrb[0].mxu0
  %426 = vmatprep.mubr.f32.mxu0 0.0
  %427 = vmatmul.mubr.f32.gmra.mrb[0].mxu0 %v70
  %v428 = vpop.f32.mrb[0].mxu0
  %v429 = vadd.f32 0.0, %v428
  %v430 = vpop.f32.mrb[0].mxu0
  %431 = vmatprep.mubr.f32.mxu0 0.0
  %432 = vmatmul.mubr.f32.gmra.mrb[0].mxu0 %v73
  %v433 = vpop.f32.mrb[0].mxu0
  %v434 = vadd.f32 0.0, %v433
  %v435 = vpop.f32.mrb[0].mxu0
  %436 = vdwg.mxu0
  %v438 = vsel %vm62, %v419, 0
  %v441 = vsel %vm62, %v424, 0
  %v444 = vsel %vm62, %v429, 0
  %v447 = vsel %vm62, %v434, 0
  %449 = vmatprep.subr.mxu0 %v22
  %450 = vmatpush1.msra.mxu0 %v21
  %451 = vmatprep.subr.mxu0 %v26
  %452 = vmatpush1.msra.mxu0 %v25
  %453 = vmatprep.subr.mxu0 %v30
  %454 = vmatpush1.msra.mxu0 %v29
  %455 = vmatprep.subr.mxu0 %v34
  %456 = vmatpush1.msra.mxu0 %v33
  %457 = vmatprep.subr.mxu0 %v38
  %458 = vmatpush1.msra.mxu0 %v37
  %459 = vmatprep.subr.mxu0 %v42
  %460 = vmatpush1.msra.mxu0 %v41
  %461 = vmatprep.subr.mxu0 %v46
  %462 = vmatpush1.msra.mxu0 %v45
  %463 = vmatprep.subr.mxu0 %v50
  %464 = vmatpush1.msra.mxu0 %v49
  %465 = vmatprep.subr.mxu0 0.0
  %466 = vmatpush1.msra.mxu0 0.0
  %467 = vmatprep.subr.mxu0 0.0
  %468 = vmatpush1.msra.mxu0 0.0
  %469 = vmatprep.subr.mxu0 0.0
  %470 = vmatpush1.msra.mxu0 0.0
  %471 = vmatprep.subr.mxu0 0.0
  %472 = vmatpush1.msra.mxu0 0.0
  %473 = vmatprep.subr.mxu0 0.0
  %474 = vmatpush1.msra.mxu0 0.0
  %475 = vmatprep.subr.mxu0 0.0
  %476 = vmatpush1.msra.mxu0 0.0
  %477 = vmatprep.subr.mxu0 0.0
  %478 = vmatpush1.msra.mxu0 0.0
  %479 = vmatprep.subr.mxu0 0.0
  %480 = vmatpush1.msra.mxu0 0.0
  %481 = vmatprep.subr.mxu0 0.0
  %482 = vmatpush1.msra.mxu0 0.0
  %483 = vmatprep.subr.mxu0 0.0
  %484 = vmatpush1.msra.mxu0 0.0
  %485 = vmatprep.subr.mxu0 0.0
  %486 = vmatpush1.msra.mxu0 0.0
  %487 = vmatprep.subr.mxu0 0.0
  %488 = vmatpush1.msra.mxu0 0.0
  %489 = vmatprep.subr.mxu0 0.0
  %490 = vmatpush1.msra.mxu0 0.0
  %491 = vmatprep.subr.mxu0 0.0
  %492 = vmatpush1.msra.mxu0 0.0
  %493 = vmatprep.subr.mxu0 0.0
  %494 = vmatpush1.msra.mxu0 0.0
  %495 = vmatprep.subr.mxu0 0.0
  %496 = vmatpush1.msra.mxu0 0.0
  %497 = vmatprep.subr.mxu0 0.0
  %498 = vmatpush1.msra.mxu0 0.0
  %499 = vmatprep.subr.mxu0 0.0
  %500 = vmatpush1.msra.mxu0 0.0
  %501 = vmatprep.subr.mxu0 0.0
  %502 = vmatpush1.msra.mxu0 0.0
  %503 = vmatprep.subr.mxu0 0.0
  %504 = vmatpush1.msra.mxu0 0.0
  %505 = vmatprep.subr.mxu0 0.0
  %506 = vmatpush1.msra.mxu0 0.0
  %507 = vmatprep.subr.mxu0 0.0
  %508 = vmatpush1.msra.mxu0 0.0
  %509 = vmatprep.subr.mxu0 0.0
  %510 = vmatpush1.msra.mxu0 0.0
  %511 = vmatprep.subr.mxu0 0.0
  %512 = vmatpush1.msra.mxu0 0.0
  %513 = vmatprep.mubr.f32.mxu0 0.0
  %514 = vmatmul.mubr.f32.gmra.mrb[0].mxu0 %v438
  %v515 = vpop.f32.mrb[0].mxu0
  %v516 = vadd.f32 0.0, %v515
  %v517 = vpop.f32.mrb[0].mxu0
  %518 = vmatprep.mubr.f32.mxu0 0.0
  %519 = vmatmul.mubr.f32.gmra.mrb[0].mxu0 %v441
  %v520 = vpop.f32.mrb[0].mxu0
  %v521 = vpop.f32.mrb[0].mxu0
  %v522 = vadd.f32 0.0, %v521
  %523 = vmatprep.mubr.f32.mxu0 0.0
  %524 = vmatmul.mubr.f32.gmra.mrb[0].mxu0 %v444
  %v525 = vpop.f32.mrb[0].mxu0
  %v526 = vpop.f32.mrb[0].mxu0
  %527 = vmatprep.mubr.f32.mxu0 0.0
  %528 = vmatmul.mubr.f32.gmra.mrb[0].mxu0 %v447
  %v529 = vpop.f32.mrb[0].mxu0
  %v530 = vpop.f32.mrb[0].mxu0
  %531 = vdwg.mxu0
  %532 = vmatprep.subr.mxu0 %v24
  %533 = vmatpush1.msra.mxu0 %v23
  %534 = vmatprep.subr.mxu0 %v28
  %535 = vmatpush1.msra.mxu0 %v27
  %536 = vmatprep.subr.mxu0 %v32
  %537 = vmatpush1.msra.mxu0 %v31
  %538 = vmatprep.subr.mxu0 %v36
  %539 = vmatpush1.msra.mxu0 %v35
  %540 = vmatprep.subr.mxu0 %v40
  %541 = vmatpush1.msra.mxu0 %v39
  %542 = vmatprep.subr.mxu0 %v44
  %543 = vmatpush1.msra.mxu0 %v43
  %544 = vmatprep.subr.mxu0 %v48
  %545 = vmatpush1.msra.mxu0 %v47
  %546 = vmatprep.subr.mxu0 %v52
  %547 = vmatpush1.msra.mxu0 %v51
  %548 = vmatprep.subr.mxu0 0.0
  %549 = vmatpush1.msra.mxu0 0.0
  %550 = vmatprep.subr.mxu0 0.0
  %551 = vmatpush1.msra.mxu0 0.0
  %552 = vmatprep.subr.mxu0 0.0
  %553 = vmatpush1.msra.mxu0 0.0
  %554 = vmatprep.subr.mxu0 0.0
  %555 = vmatpush1.msra.mxu0 0.0
  %556 = vmatprep.subr.mxu0 0.0
  %557 = vmatpush1.msra.mxu0 0.0
  %558 = vmatprep.subr.mxu0 0.0
  %559 = vmatpush1.msra.mxu0 0.0
  %560 = vmatprep.subr.mxu0 0.0
  %561 = vmatpush1.msra.mxu0 0.0
  %562 = vmatprep.subr.mxu0 0.0
  %563 = vmatpush1.msra.mxu0 0.0
  %564 = vmatprep.subr.mxu0 0.0
  %565 = vmatpush1.msra.mxu0 0.0
  %566 = vmatprep.subr.mxu0 0.0
  %567 = vmatpush1.msra.mxu0 0.0
  %568 = vmatprep.subr.mxu0 0.0
  %569 = vmatpush1.msra.mxu0 0.0
  %570 = vmatprep.subr.mxu0 0.0
  %571 = vmatpush1.msra.mxu0 0.0
  %572 = vmatprep.subr.mxu0 0.0
  %573 = vmatpush1.msra.mxu0 0.0
  %574 = vmatprep.subr.mxu0 0.0
  %575 = vmatpush1.msra.mxu0 0.0
  %576 = vmatprep.subr.mxu0 0.0
  %577 = vmatpush1.msra.mxu0 0.0
  %578 = vmatprep.subr.mxu0 0.0
  %579 = vmatpush1.msra.mxu0 0.0
  %580 = vmatprep.subr.mxu0 0.0
  %581 = vmatpush1.msra.mxu0 0.0
  %582 = vmatprep.subr.mxu0 0.0
  %583 = vmatpush1.msra.mxu0 0.0
  %584 = vmatprep.subr.mxu0 0.0
  %585 = vmatpush1.msra.mxu0 0.0
  %586 = vmatprep.subr.mxu0 0.0
  %587 = vmatpush1.msra.mxu0 0.0
  %588 = vmatprep.subr.mxu0 0.0
  %589 = vmatpush1.msra.mxu0 0.0
  %590 = vmatprep.subr.mxu0 0.0
  %591 = vmatpush1.msra.mxu0 0.0
  %592 = vmatprep.subr.mxu0 0.0
  %593 = vmatpush1.msra.mxu0 0.0
  %594 = vmatprep.subr.mxu0 0.0
  %595 = vmatpush1.msra.mxu0 0.0
  %596 = vmatprep.mubr.f32.mxu0 0.0
  %597 = vmatmul.mubr.f32.gmra.mrb[0].mxu0 %v438
  %v598 = vpop.f32.mrb[0].mxu0
  %v599 = vpop.f32.mrb[0].mxu0
  %600 = vmatprep.mubr.f32.mxu0 0.0
  %601 = vmatmul.mubr.f32.gmra.mrb[0].mxu0 %v441
  %v602 = vpop.f32.mrb[0].mxu0
  %v603 = vpop.f32.mrb[0].mxu0
  %604 = vmatprep.mubr.f32.mxu0 0.0
  %605 = vmatmul.mubr.f32.gmra.mrb[0].mxu0 %v444
  %v606 = vpop.f32.mrb[0].mxu0
  %v607 = vadd.f32 0.0, %v606
  %v608 = vpop.f32.mrb[0].mxu0
  %609 = vmatprep.mubr.f32.mxu0 0.0
  %610 = vmatmul.mubr.f32.gmra.mrb[0].mxu0 %v447
  %v611 = vpop.f32.mrb[0].mxu0
  %v612 = vpop.f32.mrb[0].mxu0
  %v613 = vadd.f32 0.0, %v612
  %614 = vdwg.mxu0
  %v615 = vadd.f32 %v53, %v516
  %v616 = vadd.f32 %v615, %v522
  %v617 = vadd.f32 %v616, %v607
  %v618 = vadd.f32 %v617, %v613
  %s619 = scalar_lea.vmem %s4, 8
  %620 = vst [vmem:[%s619] sm:$0xff] %v618
  // Predicated region
  $region18: #{fused_forward.1} parent=0 // pred_check
    _
  $region19: #{fused_forward.1} parent=0 // pred_check_branch
    %622 = sbr.rel (0) target = $region21
  $region20: #{fused_forward.1} parent=0 // pred_region
    _
  $region21: #{fused_forward.1} parent=0 // pred_fallthru
    _
  // Predicated region
  $region22: #{fused_forward.1} parent=0 // pred_check
    _
  $region23: #{fused_forward.1} parent=0 // pred_check_branch
    %624 = sbr.rel (0) target = $region25
  $region24: #{fused_forward.1} parent=0 // pred_region
    _
  $region25: #{fused_forward.1} parent=0 // pred_fallthru
    _

</llo_original>
